<compile_context>
chip_gen: v5e
topology: v5e:2x2
jax: 0.10.0
libtpu: 0.0.40
codegen_flags: <defaults>
</compile_context>

<pallas_src>
import jax
import jax.numpy as jnp
from jax.experimental import pallas as pl
from jax.experimental.pallas import tpu as pltpu


def _round_up(x, m):
    return (x + m - 1) // m * m


def _pick_divisor_tile(total, target, quantum):
    """Largest multiple of `quantum` that divides `total` and is <= target."""
    assert total % quantum == 0
    t = min(target, total)
    t = max((t // quantum) * quantum, quantum)
    while total % t != 0:
        t -= quantum
    return t


def _vmem_capacity_bytes():
    """Physical VMEM per TensorCore (v5e/v6e: 128 MiB, v7x: 64 MiB)."""
    try:
        cap = int(pltpu.get_tpu_info().vmem_capacity_bytes)
        if (16 << 20) <= cap <= (1 << 30):
            return cap
    except Exception:
        pass
    return 64 << 20  # conservative fallback = smallest current generation


# ---------------------------------------------------------------------------
# Kernel bodies
# ---------------------------------------------------------------------------

def _make_resident_kernel(th, n_chunks):
    """Weights fully resident in VMEM; hidden dim processed in th-wide chunks."""
    def kernel(x_ref, w1_ref, b1_ref, w2_ref, b2_ref, o_ref):
        x = x_ref[...]
        tm = x.shape[0]
        e_out = o_ref.shape[-1]
        acc = jnp.zeros((tm, e_out), jnp.float32)
        # Static-slice chunking keeps the (tm, H) intermediate out of VMEM and
        # the per-chunk h near the vreg budget; slices of a Ref are free.
        for c in range(n_chunks):
            off = c * th
            h = jnp.dot(x, w1_ref[:, off:off + th],
                        preferred_element_type=jnp.float32)
            h = jnp.maximum(h + b1_ref[:, off:off + th], 0.0)
            w2c = w2_ref[off:off + th, :]
            acc = acc + jnp.dot(h.astype(w2c.dtype), w2c,
                                preferred_element_type=jnp.float32)
        # Dropout: identity at inference.
        o_ref[...] = (acc + b2_ref[...]).astype(o_ref.dtype)
    return kernel


def _ffn_tiled_kernel(x_ref, w1_ref, b1_ref, w2_ref, b2_ref, o_ref, acc_ref):
    # Fallback: H is a reduction grid axis; (E,th)/(th,E) weight slices stream.
    hid = pl.program_id(1)

    @pl.when(hid == 0)
    def _():
        acc_ref[...] = jnp.zeros_like(acc_ref)

    h = jnp.dot(x_ref[...], w1_ref[...], preferred_element_type=jnp.float32)
    h = jnp.maximum(h + b1_ref[...], 0.0)
    acc_ref[...] += jnp.dot(h.astype(w2_ref.dtype), w2_ref[...],
                            preferred_element_type=jnp.float32)

    @pl.when(hid == pl.num_programs(1) - 1)
    def _():
        # Dropout identity; add output bias, write lane-dense tile.
        o_ref[...] = (acc_ref[...] + b2_ref[...]).astype(o_ref.dtype)


# ---------------------------------------------------------------------------
# Wrapper
# ---------------------------------------------------------------------------

def feed_forward(x, w1, b1, w2, b2, *, tm=None, th=512, compute_dtype=None,
                 force_tiled=False):
    """x: [B, S, E]; w1: [E, H]; b1: [H]; w2: [H, E]; b2: [E] -> [B, S, E]."""
    B, S, E = x.shape
    H = w1.shape[1]
    M = B * S
    out_dtype = x.dtype

    if compute_dtype is not None:
        x = x.astype(compute_dtype)
        w1 = w1.astype(compute_dtype)
        w2 = w2.astype(compute_dtype)

    xb = jnp.dtype(x.dtype).itemsize
    wb = jnp.dtype(w1.dtype).itemsize
    ob = jnp.dtype(out_dtype).itemsize
    sub = max(8, 32 // xb)                      # sublane quantum per dtype

    # Lane-dense padding; 256-multiples feed full 256x256 MXU passes on
    # v6e/v7x when the dims are big enough (128 is the lane minimum).
    E_pad = _round_up(E, 256 if E >= 256 else 128)
    H_pad = _round_up(H, 256 if H >= 256 else 128)

    cap = _vmem_capacity_bytes()
    budget = int(cap * 0.85)                    # headroom below physical VMEM

    # Pad weights/biases only when actually needed (avoid HBM->HBM copies).
    w1p = w1 if w1.shape == (E_pad, H_pad) else jnp.pad(
        w1, ((0, E_pad - E), (0, H_pad - H)))
    w2p = w2 if w2.shape == (H_pad, E_pad) else jnp.pad(
        w2, ((0, H_pad - H), (0, E_pad - E)))
    b1p = b1.reshape(1, H)
    if H_pad != H:
        b1p = jnp.pad(b1p, ((0, 0), (0, H_pad - H)))
    b2p = b2.reshape(1, E)
    if E_pad != E:
        b2p = jnp.pad(b2p, ((0, 0), (0, E_pad - E)))
    bb = jnp.dtype(b1p.dtype).itemsize

    weight_bytes = 2 * E_pad * H_pad * wb + H_pad * bb + E_pad * bb

    # Hidden tile/chunk: multiple of 128 dividing H_pad, capped at `th`.
    th = _pick_divisor_tile(H_pad, th, 128)

    # Bigger row tiles on 128 MiB parts (v5e/v6e); 256 default on v7x.
    tm_target = tm if tm is not None else (512 if cap >= (96 << 20) else 256)

    # Weights-resident fast path: padded weights (double-buffered) must leave
    # roughly half the budget for x/out tiles + accumulator + h chunks.
    resident = (not force_tiled) and (2 * weight_bytes <= budget // 2)

    if resident:
        per_row = (2 * E_pad * xb        # x tile (double-buffered)
                   + 2 * E_pad * ob      # out tile (double-buffered)
                   + E_pad * 4           # f32 accumulator
                   + th * 4              # f32 h chunk
                   + th * wb)            # cast copy of h chunk
        room = budget - 2 * weight_bytes
        tm_cap = max(sub, (room // per_row) // sub * sub)
        tm_r = min(tm_target, _round_up(M, sub), tm_cap)
        tm_r = max(sub, (tm_r // sub) * sub)
        est_vmem = (2 * weight_bytes
                    + 2 * tm_r * E_pad * xb + 2 * tm_r * E_pad * ob
                    + tm_r * E_pad * 4 + tm_r * th * 4 + tm_r * th * wb)
        th_eff = th
    else:
        def est_fn(tmv, thv):
            return (2 * tmv * E_pad * xb + 2 * E_pad * thv * wb + 2 * thv * bb
                    + 2 * thv * E_pad * wb + 2 * E_pad * bb
                    + 2 * tmv * E_pad * ob + tmv * E_pad * 4
                    + tmv * thv * 4 + tmv * thv * wb)
        tm_r = max(sub, (min(tm_target, _round_up(M, sub)) // sub) * sub)
        th_eff = th
        while est_fn(tm_r, th_eff) > budget and th_eff > 128:
            th_eff = _pick_divisor_tile(H_pad, th_eff // 2, 128)
        while est_fn(tm_r, th_eff) > budget and tm_r > sub:
            tm_r = max(sub, (tm_r // 2 // sub) * sub)
        est_vmem = est_fn(tm_r, th_eff)

    M_pad = _round_up(M, tm_r)
    x2 = x.reshape(M, E)
    if (M_pad, E_pad) != (M, E):
        x2 = jnp.pad(x2, ((0, M_pad - M), (0, E_pad - E)))

    vmem_limit = min(budget, max(32 << 20, int(est_vmem * 1.25) + (1 << 20)))
    restream = 1 if resident else (M_pad // tm_r)
    cost = pl.CostEstimate(
        flops=4 * M_pad * E_pad * H_pad,
        transcendentals=0,
        bytes_accessed=(M_pad * E_pad * xb + weight_bytes * restream
                        + M_pad * E_pad * ob))

    if resident:
        n_chunks = H_pad // th_eff
        out2 = pl.pallas_call(
            _make_resident_kernel(th_eff, n_chunks),
            out_shape=jax.ShapeDtypeStruct((M_pad, E_pad), out_dtype),
            grid_spec=pltpu.PrefetchScalarGridSpec(
                num_scalar_prefetch=0,
                grid=(M_pad // tm_r,),
                in_specs=[
                    pl.BlockSpec((tm_r, E_pad), lambda i: (i, 0)),    # x rows
                    pl.BlockSpec((E_pad, H_pad), lambda i: (0, 0)),   # W1 (resident)
                    pl.BlockSpec((1, H_pad), lambda i: (0, 0)),       # b1
                    pl.BlockSpec((H_pad, E_pad), lambda i: (0, 0)),   # W2 (resident)
                    pl.BlockSpec((1, E_pad), lambda i: (0, 0)),       # b2
                ],
                out_specs=pl.BlockSpec((tm_r, E_pad), lambda i: (i, 0)),
            ),
            compiler_params=pltpu.CompilerParams(
                dimension_semantics=("parallel",),
                vmem_limit_bytes=vmem_limit),
            cost_estimate=cost,
        )(x2, w1p, b1p, w2p, b2p)
    else:
        out2 = pl.pallas_call(
            _ffn_tiled_kernel,
            out_shape=jax.ShapeDtypeStruct((M_pad, E_pad), out_dtype),
            grid_spec=pltpu.PrefetchScalarGridSpec(
                num_scalar_prefetch=0,
                grid=(M_pad // tm_r, H_pad // th_eff),
                in_specs=[
                    pl.BlockSpec((tm_r, E_pad), lambda i, h: (i, 0)),   # x rows
                    pl.BlockSpec((E_pad, th_eff), lambda i, h: (0, h)),  # W1 cols
                    pl.BlockSpec((1, th_eff), lambda i, h: (0, h)),      # b1
                    pl.BlockSpec((th_eff, E_pad), lambda i, h: (h, 0)),  # W2 rows
                    pl.BlockSpec((1, E_pad), lambda i, h: (0, 0)),       # b2
                ],
                out_specs=pl.BlockSpec((tm_r, E_pad), lambda i, h: (i, 0)),
                scratch_shapes=[pltpu.VMEM((tm_r, E_pad), jnp.float32)],
            ),
            compiler_params=pltpu.CompilerParams(
                dimension_semantics=("parallel", "arbitrary"),
                vmem_limit_bytes=vmem_limit),
            cost_estimate=cost,
        )(x2, w1p, b1p, w2p, b2p)

    return out2[:M, :E].reshape(B, S, E)


def _reference(x, w1, b1, w2, b2):
    h = jnp.maximum(x @ w1 + b1, 0.0)
    return h @ w2 + b2


if __name__ == "__main__":
    B, S, E, H = 2, 8, 32, 64
    dropout_p = 0.1  # unused at inference (nn.Dropout is identity in eval mode)

    key = jax.random.PRNGKey(0)
    kx, kw1, kb1, kw2, kb2 = jax.random.split(key, 5)

    x = jax.random.normal(kx, (B, S, E), dtype=jnp.float32)
    w1 = jax.random.uniform(kw1, (E, H), jnp.float32, -1.0, 1.0) / jnp.sqrt(E)
    b1 = jax.random.uniform(kb1, (H,), jnp.float32, -1.0, 1.0) / jnp.sqrt(E)
    w2 = jax.random.uniform(kw2, (H, E), jnp.float32, -1.0, 1.0) / jnp.sqrt(H)
    b2 = jax.random.uniform(kb2, (E,), jnp.float32, -1.0, 1.0) / jnp.sqrt(H)

    ref = _reference(x, w1, b1, w2, b2)

    # 1) Weights-resident fast path, f32 (exact semantics).
    out = jax.block_until_ready(feed_forward(x, w1, b1, w2, b2))
    assert out.shape == (B, S, E)
    assert jnp.allclose(out, ref, atol=1e-5, rtol=1e-5)

    # 2) Tiled fallback path (H reduction axis), f32.
    out_t = jax.block_until_ready(feed_forward(x, w1, b1, w2, b2, force_tiled=True))
    assert jnp.allclose(out_t, ref, atol=1e-5, rtol=1e-5)

    # 3) Resident path with multiple in-kernel hidden chunks (H_pad > th).
    H2 = 640
    kw1b, kb1b, kw2b, kb2b = jax.random.split(kw1, 4)
    w1b = jax.random.uniform(kw1b, (E, H2), jnp.float32, -1.0, 1.0) / jnp.sqrt(E)
    b1b = jax.random.uniform(kb1b, (H2,), jnp.float32, -1.0, 1.0) / jnp.sqrt(E)
    w2b = jax.random.uniform(kw2b, (H2, E), jnp.float32, -1.0, 1.0) / jnp.sqrt(H2)
    b2b = jax.random.uniform(kb2b, (E,), jnp.float32, -1.0, 1.0) / jnp.sqrt(H2)
    ref_b = _reference(x, w1b, b1b, w2b, b2b)
    out_b = jax.block_until_ready(feed_forward(x, w1b, b1b, w2b, b2b))
    assert jnp.allclose(out_b, ref_b, atol=2e-3, rtol=2e-3)

    # 4) bf16 weights/activations (v6e/v7x MXU fast path), looser tolerance.
    out_bf16 = jax.block_until_ready(
        feed_forward(x.astype(jnp.bfloat16),
                     w1.astype(jnp.bfloat16), b1.astype(jnp.bfloat16),
                     w2.astype(jnp.bfloat16), b2.astype(jnp.bfloat16)))
    assert jnp.allclose(out_bf16.astype(jnp.float32), ref, atol=1e-1, rtol=1e-1)

    print("KERNEL_OK")
</pallas_src>

<mosaic_0001>
module attributes {stable_mosaic.version = 11 : i64} {
  func.func @kernel(%arg0: i32, %arg1: memref<16x128xf32, #tpu.memory_space<vmem>>, %arg2: memref<128x128xf32, #tpu.memory_space<vmem>>, %arg3: memref<1x128xf32, #tpu.memory_space<vmem>>, %arg4: memref<128x128xf32, #tpu.memory_space<vmem>>, %arg5: memref<1x128xf32, #tpu.memory_space<vmem>>, %arg6: memref<16x128xf32, #tpu.memory_space<vmem>>) attributes {dimension_semantics = [#tpu.dimension_semantics<parallel>], iteration_bounds = array<i64: 1>, scalar_prefetch = 0 : i64, scratch_operands = 0 : i64, tpu.core_type = #tpu.core_type<tc>, window_params = [{transform_indices = @transform_0, window_bounds = array<i64: 16, 128>}, {pipeline_mode = #tpu.pipeline_mode<synchronous>, transform_indices = @transform_1, window_bounds = array<i64: 128, 128>}, {pipeline_mode = #tpu.pipeline_mode<synchronous>, transform_indices = @transform_2, window_bounds = array<i64: 1, 128>}, {pipeline_mode = #tpu.pipeline_mode<synchronous>, transform_indices = @transform_3, window_bounds = array<i64: 128, 128>}, {pipeline_mode = #tpu.pipeline_mode<synchronous>, transform_indices = @transform_4, window_bounds = array<i64: 1, 128>}, {transform_indices = @transform_5, window_bounds = array<i64: 16, 128>}]} {
    %c0 = arith.constant 0 : index
    %c0_0 = arith.constant 0 : index
    %0 = vector.load %arg1[%c0, %c0_0] : memref<16x128xf32, #tpu.memory_space<vmem>>, vector<16x128xf32>
    %cst = arith.constant 0.000000e+00 : f32
    %1 = vector.broadcast %cst : f32 to vector<16x128xf32>
    %c0_1 = arith.constant 0 : index
    %c0_2 = arith.constant 0 : index
    %2 = vector.load %arg2[%c0_1, %c0_2] : memref<128x128xf32, #tpu.memory_space<vmem>>, vector<128x128xf32>
    %cst_3 = arith.constant dense<0.000000e+00> : vector<16x128xf32>
    %3 = tpu.matmul %0, %2, %cst_3 {dimension_numbers = #tpu.dot_dimension_numbers<[1], [0], [0], [1], [0, 0, 1, 1], [], []>} : vector<16x128xf32>, vector<128x128xf32>, vector<16x128xf32> -> vector<16x128xf32>
    %c0_4 = arith.constant 0 : index
    %c0_5 = arith.constant 0 : index
    %4 = vector.load %arg3[%c0_4, %c0_5] : memref<1x128xf32, #tpu.memory_space<vmem>>, vector<1x128xf32>
    %5 = vector.broadcast %4 : vector<1x128xf32> to vector<16x128xf32>
    %6 = arith.addf %3, %5 : vector<16x128xf32>
    %cst_6 = arith.constant 0.000000e+00 : f32
    %7 = vector.broadcast %cst_6 : f32 to vector<16x128xf32>
    %8 = arith.maximumf %6, %7 : vector<16x128xf32>
    %c0_7 = arith.constant 0 : index
    %c0_8 = arith.constant 0 : index
    %9 = vector.load %arg4[%c0_7, %c0_8] : memref<128x128xf32, #tpu.memory_space<vmem>>, vector<128x128xf32>
    %cst_9 = arith.constant dense<0.000000e+00> : vector<16x128xf32>
    %10 = tpu.matmul %8, %9, %cst_9 {dimension_numbers = #tpu.dot_dimension_numbers<[1], [0], [0], [1], [0, 0, 1, 1], [], []>} : vector<16x128xf32>, vector<128x128xf32>, vector<16x128xf32> -> vector<16x128xf32>
    %11 = arith.addf %1, %10 : vector<16x128xf32>
    %c0_10 = arith.constant 0 : index
    %c0_11 = arith.constant 0 : index
    %12 = vector.load %arg5[%c0_10, %c0_11] : memref<1x128xf32, #tpu.memory_space<vmem>>, vector<1x128xf32>
    %13 = vector.broadcast %12 : vector<1x128xf32> to vector<16x128xf32>
    %14 = arith.addf %11, %13 : vector<16x128xf32>
    %c0_12 = arith.constant 0 : index
    %c0_13 = arith.constant 0 : index
    %15 = vector.load %arg6[%c0_12, %c0_13] : memref<16x128xf32, #tpu.memory_space<vmem>>, vector<16x128xf32>
    tpu.vector_store %arg6[%c0_12, %c0_13], %14 {strides = array<i32>} : memref<16x128xf32, #tpu.memory_space<vmem>>, vector<16x128xf32>,
    return
  }
  func.func @transform_0(%arg0: i32) -> (i32, i32) {
    %c0_i32 = arith.constant 0 : i32
    %c0_i32_0 = arith.constant 0 : i32
    return %arg0, %c0_i32 : i32, i32
  }
  func.func @transform_1(%arg0: i32) -> (i32, i32) {
    %c0_i32 = arith.constant 0 : i32
    %c0_i32_0 = arith.constant 0 : i32
    %c0_i32_1 = arith.constant 0 : i32
    return %c0_i32, %c0_i32_0 : i32, i32
  }
  func.func @transform_2(%arg0: i32) -> (i32, i32) {
    %c0_i32 = arith.constant 0 : i32
    %c0_i32_0 = arith.constant 0 : i32
    %c0_i32_1 = arith.constant 0 : i32
    return %c0_i32, %c0_i32_0 : i32, i32
  }
  func.func @transform_3(%arg0: i32) -> (i32, i32) {
    %c0_i32 = arith.constant 0 : i32
    %c0_i32_0 = arith.constant 0 : i32
    %c0_i32_1 = arith.constant 0 : i32
    return %c0_i32, %c0_i32_0 : i32, i32
  }
  func.func @transform_4(%arg0: i32) -> (i32, i32) {
    %c0_i32 = arith.constant 0 : i32
    %c0_i32_0 = arith.constant 0 : i32
    %c0_i32_1 = arith.constant 0 : i32
    return %c0_i32, %c0_i32_0 : i32, i32
  }
  func.func @transform_5(%arg0: i32) -> (i32, i32) {
    %c0_i32 = arith.constant 0 : i32
    %c0_i32_0 = arith.constant 0 : i32
    return %arg0, %c0_i32 : i32, i32
  }
}

</mosaic_0001>

<llo_original>
// kernel: tpu_custom_call.1
$region0: #{tpu_custom_call.1}
  #allocation0 [shape = 'u32[]', space=smem, size = 0x4, offset = 0x4, fixed_abs, tag = 'smem constant byte address 0x4 - core index']
  #allocation1 [shape = 'u32[72,128]{1,0:T(1,128)}', space=vmem, size = 0x9000, scoped, tag = 'internal scratch']
  %s0 = inlined_call_operand.hbm [shape: f32[16,128], index: 0, kind: input, shape index: {}]
  %s1 = inlined_call_operand.hbm [shape: f32[128,128], index: 1, kind: input, shape index: {}]
  %s2 = inlined_call_operand.vmem [shape: f32[1,128], index: 2, kind: input, shape index: {}]
  %s3 = inlined_call_operand.hbm [shape: f32[128,128], index: 3, kind: input, shape index: {}]
  %s4 = inlined_call_operand.vmem [shape: f32[1,128], index: 4, kind: input, shape index: {}]
  %s5 = inlined_call_operand.hbm [shape: f32[16,128], index: 5, kind: output, shape index: {}]
  %s6 = sld [smem:[#allocation0]]
  $region42: #{tpu_custom_call.1} parent=0
    _
  %s8 = ssub.s32 1, %s6
  %s9 = scalar_select 0, %s8, %s6
  $region1: #{tpu_custom_call.1} parent=0
    #allocation2 [shape = 'u8[8192]{0}', space=vmem, size = 0x2000, scoped, tag = 'input window, operand 0, single buffered']
    #allocation3 [shape = 's32[1]{0}', space=sflag, size = 0x4, scoped, tag = 'scoped memory for tpu_custom_call.1']
    #allocation4 [shape = 's32[1]{0}', space=sflag, size = 0x4, scoped, tag = 'scoped memory for tpu_custom_call.1']
    #allocation5 [shape = 'u8[65536]{0}', space=vmem, size = 0x10000, scoped, tag = 'input window, operand 1, single buffered']
    #allocation6 [shape = 's32[1]{0}', space=sflag, size = 0x4, scoped, tag = 'scoped memory for tpu_custom_call.1']
    #allocation7 [shape = 'u8[65536]{0}', space=vmem, size = 0x10000, scoped, tag = 'input window, operand 3, single buffered']
    #allocation8 [shape = 'u8[8192]{0}', space=vmem, size = 0x2000, scoped, tag = 'output window, operand 0, single buffered']
    %10 = vsyncpa [#allocation3], 0
    %11 = vsyncpa [#allocation6], 0
    %12 = vsyncpa [#allocation4], 0
    // Predicated region
    $region2: #{tpu_custom_call.1} parent=1 // pred_check
      _
    $region3: #{tpu_custom_call.1} parent=1 // pred_check_branch
      %14 = sbr.rel (0) target = $region5
    $region4: #{tpu_custom_call.1} parent=1 // pred_region
      %16 = vsyncadd [#allocation3], 0
      %s17 = sshll.u32 %s0, 4
      %s18 = int_to_ptr.hbm [resolvable:$true] %s17
      %s19 = sshll.u32 [#allocation2], 4
      %s20 = int_to_ptr.vmem [resolvable:$true] %s19
      %25 = dma.hbm_to_vmem [thread:$0]  %s18, 256, %s20, [#allocation3], 128, 128, 8
    $region5: #{tpu_custom_call.1} parent=1 // pred_fallthru
      _
    // Predicated region
    $region6: #{tpu_custom_call.1} parent=1 // pred_check
      _
    $region7: #{tpu_custom_call.1} parent=1 // pred_check_branch
      %27 = sbr.rel (0) target = $region9
    $region8: #{tpu_custom_call.1} parent=1 // pred_region
      %29 = vsyncadd [#allocation6], 0
      %s30 = sshll.u32 %s1, 4
      %s31 = int_to_ptr.hbm [resolvable:$true] %s30
      %s32 = sshll.u32 [#allocation5], 4
      %s33 = int_to_ptr.vmem [resolvable:$true] %s32
      %38 = dma.hbm_to_vmem [thread:$0]  %s31, 2048, %s33, [#allocation6], 128, 128, 8
    $region9: #{tpu_custom_call.1} parent=1 // pred_fallthru
      _
    // Predicated region
    $region10: #{tpu_custom_call.1} parent=1 // pred_check
      _
    $region11: #{tpu_custom_call.1} parent=1 // pred_check_branch
      %40 = sbr.rel (0) target = $region13
    $region12: #{tpu_custom_call.1} parent=1 // pred_region
      _
    $region13: #{tpu_custom_call.1} parent=1 // pred_fallthru
      _
    // Predicated region
    $region14: #{tpu_custom_call.1} parent=1 // pred_check
      _
    $region15: #{tpu_custom_call.1} parent=1 // pred_check_branch
      %42 = sbr.rel (0) target = $region17
    $region16: #{tpu_custom_call.1} parent=1 // pred_region
      %44 = vsyncadd [#allocation6], 0
      %s45 = sshll.u32 %s3, 4
      %s46 = int_to_ptr.hbm [resolvable:$true] %s45
      %s47 = sshll.u32 [#allocation7], 4
      %s48 = int_to_ptr.vmem [resolvable:$true] %s47
      %53 = dma.hbm_to_vmem [thread:$0]  %s46, 2048, %s48, [#allocation6], 128, 128, 8
    $region17: #{tpu_custom_call.1} parent=1 // pred_fallthru
      _
    // Predicated region
    $region18: #{tpu_custom_call.1} parent=1 // pred_check
      _
    $region19: #{tpu_custom_call.1} parent=1 // pred_check_branch
      %55 = sbr.rel (0) target = $region21
    $region20: #{tpu_custom_call.1} parent=1 // pred_region
      _
    $region21: #{tpu_custom_call.1} parent=1 // pred_fallthru
      _
    // Predicated region
    $region22: #{tpu_custom_call.1} parent=1 // pred_check
      _
    $region23: #{tpu_custom_call.1} parent=1 // pred_check_branch
      %57 = sbr.rel (0) target = $region25
    $region24: #{tpu_custom_call.1} parent=1 // pred_region
      %59 = dma.done [#allocation3], 256
    $region25: #{tpu_custom_call.1} parent=1 // pred_fallthru
      _
    // Predicated region
    $region26: #{tpu_custom_call.1} parent=1 // pred_check
      _
    $region27: #{tpu_custom_call.1} parent=1 // pred_check_branch
      %61 = sbr.rel (0) target = $region29
    $region28: #{tpu_custom_call.1} parent=1 // pred_region
      %63 = dma.done [#allocation6], 2048
    $region29: #{tpu_custom_call.1} parent=1 // pred_fallthru
      _
    // Predicated region
    $region30: #{tpu_custom_call.1} parent=1 // pred_check
      _
    $region31: #{tpu_custom_call.1} parent=1 // pred_check_branch
      %65 = sbr.rel (0) target = $region33
    $region32: #{tpu_custom_call.1} parent=1 // pred_region
      %67 = dma.done [#allocation6], 2048
    $region33: #{tpu_custom_call.1} parent=1 // pred_fallthru
      _
    %v68 = vld [vmem:[#allocation2] sm:$0xff]
    %v69 = vld [vmem:[#allocation2 + $0x8] sm:$0xff]
    %v70 = vld [vmem:[#allocation5] sm:$0xff]
    %v71 = vld [vmem:[#allocation5 + $0x8] sm:$0xff]
    %v72 = vld [vmem:[#allocation5 + $0x10] sm:$0xff]
    %v73 = vld [vmem:[#allocation5 + $0x18] sm:$0xff]
    %v74 = vld [vmem:[#allocation5 + $0x20] sm:$0xff]
    %v75 = vld [vmem:[#allocation5 + $0x28] sm:$0xff]
    %v76 = vld [vmem:[#allocation5 + $0x30] sm:$0xff]
    %v77 = vld [vmem:[#allocation5 + $0x38] sm:$0xff]
    %v78 = vld [vmem:[#allocation5 + $0x40] sm:$0xff]
    %v79 = vld [vmem:[#allocation5 + $0x48] sm:$0xff]
    %v80 = vld [vmem:[#allocation5 + $0x50] sm:$0xff]
    %v81 = vld [vmem:[#allocation5 + $0x58] sm:$0xff]
    %v82 = vld [vmem:[#allocation5 + $0x60] sm:$0xff]
    %v83 = vld [vmem:[#allocation5 + $0x68] sm:$0xff]
    %v84 = vld [vmem:[#allocation5 + $0x70] sm:$0xff]
    %v85 = vld [vmem:[#allocation5 + $0x78] sm:$0xff]
    %v86 = vld [vmem:[%s2] sm:$0x1]
    %v88 = vperm.slane %v86, 0
    %90 = vmatpush.msra.mxu0 %v85
    %91 = vmatpush.msra.mxu0 %v84
    %92 = vmatpush.msra.mxu0 %v83
    %93 = vmatpush.msra.mxu0 %v82
    %94 = vmatpush.msra.mxu0 %v81
    %95 = vmatpush.msra.mxu0 %v80
    %96 = vmatpush.msra.mxu0 %v79
    %97 = vmatpush.msra.mxu0 %v78
    %98 = vmatpush.msra.mxu0 %v77
    %99 = vmatpush.msra.mxu0 %v76
    %100 = vmatpush.msra.mxu0 %v75
    %101 = vmatpush.msra.mxu0 %v74
    %102 = vmatpush.msra.mxu0 %v73
    %103 = vmatpush.msra.mxu0 %v72
    %104 = vmatpush.msra.mxu0 %v71
    %105 = vmatpush.msra.mxu0 %v70
    %106 = vmatmul.f32.gmra.mxu0 %v68
    %v107 = vpop.f32.mrf.mxu0
    %v108 = vadd.f32 %v88, %v107
    %109 = vmatmul.f32.gmra.mxu0 %v69
    %v110 = vpop.f32.mrf.mxu0
    %v111 = vadd.f32 %v88, %v110
    %112 = vdwg.mxu0
    %v113 = vmax.f32 %v108, 0.0
    %v114 = vmax.f32 %v111, 0.0
    %v115 = vld [vmem:[#allocation7] sm:$0xff]
    %v116 = vld [vmem:[#allocation7 + $0x8] sm:$0xff]
    %v117 = vld [vmem:[#allocation7 + $0x10] sm:$0xff]
    %v118 = vld [vmem:[#allocation7 + $0x18] sm:$0xff]
    %v119 = vld [vmem:[#allocation7 + $0x20] sm:$0xff]
    %v120 = vld [vmem:[#allocation7 + $0x28] sm:$0xff]
    %v121 = vld [vmem:[#allocation7 + $0x30] sm:$0xff]
    %v122 = vld [vmem:[#allocation7 + $0x38] sm:$0xff]
    %v123 = vld [vmem:[#allocation7 + $0x40] sm:$0xff]
    %v124 = vld [vmem:[#allocation7 + $0x48] sm:$0xff]
    %v125 = vld [vmem:[#allocation7 + $0x50] sm:$0xff]
    %v126 = vld [vmem:[#allocation7 + $0x58] sm:$0xff]
    %v127 = vld [vmem:[#allocation7 + $0x60] sm:$0xff]
    %v128 = vld [vmem:[#allocation7 + $0x68] sm:$0xff]
    %v129 = vld [vmem:[#allocation7 + $0x70] sm:$0xff]
    %v130 = vld [vmem:[#allocation7 + $0x78] sm:$0xff]
    %v131 = vld [vmem:[%s4] sm:$0x1]
    %v133 = vperm.slane %v131, 0
    %135 = vmatpush.msra.mxu0 %v130
    %136 = vmatpush.msra.mxu0 %v129
    %137 = vmatpush.msra.mxu0 %v128
    %138 = vmatpush.msra.mxu0 %v127
    %139 = vmatpush.msra.mxu0 %v126
    %140 = vmatpush.msra.mxu0 %v125
    %141 = vmatpush.msra.mxu0 %v124
    %142 = vmatpush.msra.mxu0 %v123
    %143 = vmatpush.msra.mxu0 %v122
    %144 = vmatpush.msra.mxu0 %v121
    %145 = vmatpush.msra.mxu0 %v120
    %146 = vmatpush.msra.mxu0 %v119
    %147 = vmatpush.msra.mxu0 %v118
    %148 = vmatpush.msra.mxu0 %v117
    %149 = vmatpush.msra.mxu0 %v116
    %150 = vmatpush.msra.mxu0 %v115
    %151 = vmatmul.f32.gmra.mxu0 %v113
    %v152 = vpop.f32.mrf.mxu0
    %v153 = vadd.f32 %v133, %v152
    %154 = vmatmul.f32.gmra.mxu0 %v114
    %v155 = vpop.f32.mrf.mxu0
    %v156 = vadd.f32 %v133, %v155
    %157 = vdwg.mxu0
    %158 = vst [vmem:[#allocation8] sm:$0xff] %v153
    %159 = vst [vmem:[#allocation8 + $0x8] sm:$0xff] %v156
    // Predicated region
    $region34: #{tpu_custom_call.1} parent=1 // pred_check
      _
    $region35: #{tpu_custom_call.1} parent=1 // pred_check_branch
      %161 = sbr.rel (0) target = $region37
    $region36: #{tpu_custom_call.1} parent=1 // pred_region
      %163 = vsyncadd [#allocation4], 0
      %s164 = sshll.u32 [#allocation8], 4
      %s165 = int_to_ptr.vmem [resolvable:$true] %s164
      %s166 = sshll.u32 %s5, 4
      %s167 = int_to_ptr.hbm [resolvable:$true] %s166
      %172 = dma.vmem_to_hbm [thread:$0]  %s165, 256, %s167, [#allocation4], 128, 128, 8
    $region37: #{tpu_custom_call.1} parent=1 // pred_fallthru
      _
    // Predicated region
    $region38: #{tpu_custom_call.1} parent=1 // pred_check
      _
    $region39: #{tpu_custom_call.1} parent=1 // pred_check_branch
      %174 = sbr.rel (0) target = $region41
    $region40: #{tpu_custom_call.1} parent=1 // pred_region
      %176 = dma.done [#allocation4], 256
    $region41: #{tpu_custom_call.1} parent=1 // pred_fallthru
      _
    %177 = vsyncpa [#allocation3], 1
    %178 = vsyncpa [#allocation6], 1
    %179 = vsyncpa [#allocation4], 1

</llo_original>
